<compile_context>
chip_gen: v6e
topology: v6e:2x2x1
jax: 0.10.0
libtpu: 0.0.40
codegen_flags: <defaults>
</compile_context>

<pallas_src>
import functools

import jax
import jax.numpy as jnp
from jax.experimental import pallas as pl
from jax.experimental.pallas import tpu as pltpu


def _round_up(x, m):
    return (x + m - 1) // m * m


def net_kernel(x_ref, m_ref, w1_ref, b1_ref, w2_ref, b2_ref, o_ref):
    # x_ref: (F, TB)  batch on lanes
    x = x_ref[...]
    # fc1: (H, F) @ (F, TB) + (H, 1)  -> (H, TB)   (MXU)
    h = jnp.dot(w1_ref[...], x, preferred_element_type=jnp.float32) + b1_ref[...]
    h = jax.nn.sigmoid(h)
    # dropout: pre-scaled keep mask (keep/(1-p)) or ones in eval mode
    h = h * m_ref[...]
    # fc2 (K=10, N=1): VPU multiply + sublane reduce instead of an MXU pass
    o = jnp.sum(h * w2_ref[...], axis=0, keepdims=True) + b2_ref[...]  # (1, TB)
    o_ref[...] = jax.nn.sigmoid(o).astype(o_ref.dtype)


def net_forward(x, params, key=None, *, training=True, p=0.5, tile_b=2048):
    """x: (B, 6) f32. params in PyTorch layout: w1 (10,6), b1 (10,), w2 (1,10), b2 (1,)."""
    w1, b1, w2, b2 = params
    B, F = x.shape
    H = w1.shape[0]

    # Lane-aligned batch tiling; keep the tile no larger than needed.
    tile_b = max(128, min(int(tile_b), _round_up(B, 128)))
    b_pad = _round_up(B, tile_b)

    # Batch-on-lanes layout: features on sublanes, batch on lanes.
    x_t = jnp.zeros((F, b_pad), jnp.float32).at[:, :B].set(x.astype(jnp.float32).T)

    if training:
        if key is None:
            key = jax.random.PRNGKey(0)
        keep = jax.random.bernoulli(key, 1.0 - p, (H, b_pad)).astype(jnp.float32)
        mask = keep * (1.0 / (1.0 - p))
    else:
        mask = jnp.ones((H, b_pad), jnp.float32)

    b1_col = b1.reshape(H, 1).astype(jnp.float32)
    w2_col = w2.reshape(H, 1).astype(jnp.float32)  # fc2 weights as a column
    b2_s = b2.reshape(1, 1).astype(jnp.float32)
    w1_f = w1.astype(jnp.float32)

    grid = (b_pad // tile_b,)

    out_t = pl.pallas_call(
        net_kernel,
        out_shape=jax.ShapeDtypeStruct((1, b_pad), jnp.float32),
        grid_spec=pltpu.PrefetchScalarGridSpec(
            num_scalar_prefetch=0,
            grid=grid,
            in_specs=[
                pl.BlockSpec((F, tile_b), lambda i: (0, i)),   # x^T   (streamed)
                pl.BlockSpec((H, tile_b), lambda i: (0, i)),   # mask  (streamed)
                pl.BlockSpec((H, F), lambda i: (0, 0)),        # w1    (resident)
                pl.BlockSpec((H, 1), lambda i: (0, 0)),        # b1    (resident)
                pl.BlockSpec((H, 1), lambda i: (0, 0)),        # w2    (resident)
                pl.BlockSpec((1, 1), lambda i: (0, 0)),        # b2    (resident)
            ],
            out_specs=pl.BlockSpec((1, tile_b), lambda i: (0, i)),  # lane-dense
        ),
        compiler_params=pltpu.CompilerParams(
            dimension_semantics=("parallel",),
            vmem_limit_bytes=32 * 1024 * 1024,
        ),
    )(x_t, mask, w1_f, b1_col, w2_col, b2_s)

    # Back to PyTorch's (B, 1) convention.
    return out_t[:, :B].T


def init_params(key):
    """Deterministic synthetic params matching nn.Linear(6,10), nn.Linear(10,1)."""
    k1, k2, k3, k4 = jax.random.split(key, 4)
    w1 = jax.random.uniform(k1, (10, 6), jnp.float32, -0.4, 0.4)   # (out, in)
    b1 = jax.random.uniform(k2, (10,), jnp.float32, -0.4, 0.4)
    w2 = jax.random.uniform(k3, (1, 10), jnp.float32, -0.3, 0.3)
    b2 = jax.random.uniform(k4, (1,), jnp.float32, -0.3, 0.3)
    return w1, b1, w2, b2


if __name__ == "__main__":
    key = jax.random.PRNGKey(0)
    pkey, xkey, dkey = jax.random.split(key, 3)

    params = init_params(pkey)
    B = 8
    x = jax.random.normal(xkey, (B, 6), jnp.float32)

    # Training mode (stochastic dropout): check shape and sigmoid range.
    out_train = jax.block_until_ready(
        net_forward(x, params, dkey, training=True, p=0.5)
    )
    assert out_train.shape == (B, 1), out_train.shape
    assert bool(jnp.all((out_train >= 0.0) & (out_train <= 1.0))), \
        "sigmoid output out of range"

    # Eval mode (dropout = identity): exact check against a pure-JAX reference.
    out_eval = jax.block_until_ready(net_forward(x, params, training=False))
    w1, b1, w2, b2 = params
    ref = jax.nn.sigmoid(jax.nn.sigmoid(x @ w1.T + b1) @ w2.T + b2)
    assert bool(jnp.allclose(out_eval, ref, atol=1e-5)), "eval-mode mismatch"

    print("KERNEL_OK")
</pallas_src>

<mosaic_0001>
module attributes {stable_mosaic.version = 11 : i64} {
  func.func @net_kernel(%arg0: i32, %arg1: memref<6x128xf32, #tpu.memory_space<vmem>>, %arg2: memref<10x128xf32, #tpu.memory_space<vmem>>, %arg3: memref<10x6xf32, #tpu.memory_space<vmem>>, %arg4: memref<10x1xf32, #tpu.memory_space<vmem>>, %arg5: memref<10x1xf32, #tpu.memory_space<vmem>>, %arg6: memref<1x1xf32, #tpu.memory_space<vmem>>, %arg7: memref<1x128xf32, #tpu.memory_space<vmem>>) attributes {dimension_semantics = [#tpu.dimension_semantics<parallel>], iteration_bounds = array<i64: 1>, scalar_prefetch = 0 : i64, scratch_operands = 0 : i64, tpu.core_type = #tpu.core_type<tc>, window_params = [{transform_indices = @transform_0, window_bounds = array<i64: 6, 128>}, {transform_indices = @transform_1, window_bounds = array<i64: 10, 128>}, {pipeline_mode = #tpu.pipeline_mode<synchronous>, transform_indices = @transform_2, window_bounds = array<i64: 10, 6>}, {pipeline_mode = #tpu.pipeline_mode<synchronous>, transform_indices = @transform_3, window_bounds = array<i64: 10, 1>}, {pipeline_mode = #tpu.pipeline_mode<synchronous>, transform_indices = @transform_4, window_bounds = array<i64: 10, 1>}, {pipeline_mode = #tpu.pipeline_mode<synchronous>, transform_indices = @transform_5, window_bounds = array<i64: 1, 1>}, {transform_indices = @transform_6, window_bounds = array<i64: 1, 128>}]} {
    %c0 = arith.constant 0 : index
    %c0_0 = arith.constant 0 : index
    %0 = vector.load %arg1[%c0, %c0_0] : memref<6x128xf32, #tpu.memory_space<vmem>>, vector<6x128xf32>
    %c0_1 = arith.constant 0 : index
    %c0_2 = arith.constant 0 : index
    %1 = vector.load %arg3[%c0_1, %c0_2] : memref<10x6xf32, #tpu.memory_space<vmem>>, vector<10x6xf32>
    %cst = arith.constant dense<0.000000e+00> : vector<10x128xf32>
    %2 = tpu.matmul %1, %0, %cst {dimension_numbers = #tpu.dot_dimension_numbers<[1], [0], [0], [1], [0, 0, 1, 1], [], []>} : vector<10x6xf32>, vector<6x128xf32>, vector<10x128xf32> -> vector<10x128xf32>
    %c0_3 = arith.constant 0 : index
    %c0_4 = arith.constant 0 : index
    %3 = vector.load %arg4[%c0_3, %c0_4] : memref<10x1xf32, #tpu.memory_space<vmem>>, vector<10x1xf32>
    %4 = vector.broadcast %3 : vector<10x1xf32> to vector<10x128xf32>
    %5 = arith.addf %2, %4 : vector<10x128xf32>
    %6 = arith.negf %5 : vector<10x128xf32>
    %7 = math.exp %6 : vector<10x128xf32>
    %cst_5 = arith.constant 1.000000e+00 : f32
    %8 = vector.broadcast %cst_5 : f32 to vector<10x128xf32>
    %9 = arith.addf %8, %7 : vector<10x128xf32>
    %10 = arith.divf %8, %9 : vector<10x128xf32>
    %c0_6 = arith.constant 0 : index
    %c0_7 = arith.constant 0 : index
    %11 = vector.load %arg2[%c0_6, %c0_7] : memref<10x128xf32, #tpu.memory_space<vmem>>, vector<10x128xf32>
    %12 = arith.mulf %10, %11 : vector<10x128xf32>
    %c0_8 = arith.constant 0 : index
    %c0_9 = arith.constant 0 : index
    %13 = vector.load %arg5[%c0_8, %c0_9] : memref<10x1xf32, #tpu.memory_space<vmem>>, vector<10x1xf32>
    %14 = vector.broadcast %13 : vector<10x1xf32> to vector<10x128xf32>
    %15 = arith.mulf %12, %14 : vector<10x128xf32>
    %cst_10 = arith.constant dense<0.000000e+00> : vector<128xf32>
    %16 = vector.multi_reduction <add>, %15, %cst_10 [0] : vector<10x128xf32> to vector<128xf32>
    %17 = vector.shape_cast %16 : vector<128xf32> to vector<1x128xf32>
    %c0_11 = arith.constant 0 : index
    %c0_12 = arith.constant 0 : index
    %18 = vector.load %arg6[%c0_11, %c0_12] : memref<1x1xf32, #tpu.memory_space<vmem>>, vector<1x1xf32>
    %19 = vector.broadcast %18 : vector<1x1xf32> to vector<1x128xf32>
    %20 = arith.addf %17, %19 : vector<1x128xf32>
    %21 = arith.negf %20 : vector<1x128xf32>
    %22 = math.exp %21 : vector<1x128xf32>
    %cst_13 = arith.constant 1.000000e+00 : f32
    %23 = vector.broadcast %cst_13 : f32 to vector<1x128xf32>
    %24 = arith.addf %23, %22 : vector<1x128xf32>
    %25 = arith.divf %23, %24 : vector<1x128xf32>
    %c0_14 = arith.constant 0 : index
    %c0_15 = arith.constant 0 : index
    %26 = vector.load %arg7[%c0_14, %c0_15] : memref<1x128xf32, #tpu.memory_space<vmem>>, vector<1x128xf32>
    tpu.vector_store %arg7[%c0_14, %c0_15], %25 {strides = array<i32>} : memref<1x128xf32, #tpu.memory_space<vmem>>, vector<1x128xf32>,
    return
  }
  func.func @transform_0(%arg0: i32) -> (i32, i32) {
    %c0_i32 = arith.constant 0 : i32
    %c0_i32_0 = arith.constant 0 : i32
    return %c0_i32, %arg0 : i32, i32
  }
  func.func @transform_1(%arg0: i32) -> (i32, i32) {
    %c0_i32 = arith.constant 0 : i32
    %c0_i32_0 = arith.constant 0 : i32
    return %c0_i32, %arg0 : i32, i32
  }
  func.func @transform_2(%arg0: i32) -> (i32, i32) {
    %c0_i32 = arith.constant 0 : i32
    %c0_i32_0 = arith.constant 0 : i32
    %c0_i32_1 = arith.constant 0 : i32
    return %c0_i32, %c0_i32_0 : i32, i32
  }
  func.func @transform_3(%arg0: i32) -> (i32, i32) {
    %c0_i32 = arith.constant 0 : i32
    %c0_i32_0 = arith.constant 0 : i32
    %c0_i32_1 = arith.constant 0 : i32
    return %c0_i32, %c0_i32_0 : i32, i32
  }
  func.func @transform_4(%arg0: i32) -> (i32, i32) {
    %c0_i32 = arith.constant 0 : i32
    %c0_i32_0 = arith.constant 0 : i32
    %c0_i32_1 = arith.constant 0 : i32
    return %c0_i32, %c0_i32_0 : i32, i32
  }
  func.func @transform_5(%arg0: i32) -> (i32, i32) {
    %c0_i32 = arith.constant 0 : i32
    %c0_i32_0 = arith.constant 0 : i32
    %c0_i32_1 = arith.constant 0 : i32
    return %c0_i32, %c0_i32_0 : i32, i32
  }
  func.func @transform_6(%arg0: i32) -> (i32, i32) {
    %c0_i32 = arith.constant 0 : i32
    %c0_i32_0 = arith.constant 0 : i32
    return %c0_i32, %arg0 : i32, i32
  }
}

</mosaic_0001>

<llo_original>
// kernel: tpu_custom_call.1
$region0: #{tpu_custom_call.1}
  #allocation0 [shape = 'u32[]', space=smem, size = 0x4, offset = 0x4, fixed_abs, tag = 'smem constant byte address 0x4 - core index']
  #allocation1 [shape = 'u32[144,128]{1,0:T(1,128)}', space=vmem, size = 0x12000, scoped, tag = 'internal scratch']
  #allocation2 [shape = 'f32[1,1]{1,0:T(1,128)S(1)}', space=vmem, size = 0x200, scoped, tag = 'scoped memory for tpu_custom_call.1']
  %s0 = inlined_call_operand.vmem [shape: f32[6,128], index: 0, kind: input, shape index: {}]
  %s1 = inlined_call_operand.vmem [shape: f32[10,128], index: 1, kind: input, shape index: {}]
  %s2 = inlined_call_operand.vmem [shape: f32[10,6], index: 2, kind: input, shape index: {}]
  %s3 = inlined_call_operand.vmem [shape: f32[10,1], index: 3, kind: input, shape index: {}]
  %s4 = inlined_call_operand.vmem [shape: f32[10,1], index: 4, kind: input, shape index: {}]
  %s5 = inlined_call_operand.<no memory space> [shape: f32[1,1], index: 5, kind: input, shape index: {}]
  %s6 = inlined_call_operand.hbm [shape: f32[1,128], index: 6, kind: output, shape index: {}]
  %s7 = sld [smem:[#allocation0]]
  $region34: #{tpu_custom_call.1} parent=0
    _
  %s9 = ssub.s32 1, %s7
  %s10 = scalar_select 0, %s9, %s7
  %v11 = vstv %s5
  %12 = vst [vmem:[#allocation2] sm:$0x1] %v11
  $region1: #{tpu_custom_call.1} parent=0
    #allocation3 [shape = 'u8[512]{0}', space=vmem, size = 0x400, scoped, tag = 'output window, operand 0, single buffered']
    #allocation4 [shape = 's32[1]{0}', space=sflag, size = 0x4, scoped, tag = 'scoped memory for tpu_custom_call.1']
    %13 = vsyncpa [#allocation4], 0
    // Predicated region
    $region2: #{tpu_custom_call.1} parent=1 // pred_check
      _
    $region3: #{tpu_custom_call.1} parent=1 // pred_check_branch
      %15 = sbr.rel (0) target = $region5
    $region4: #{tpu_custom_call.1} parent=1 // pred_region
      _
    $region5: #{tpu_custom_call.1} parent=1 // pred_fallthru
      _
    // Predicated region
    $region6: #{tpu_custom_call.1} parent=1 // pred_check
      _
    $region7: #{tpu_custom_call.1} parent=1 // pred_check_branch
      %17 = sbr.rel (0) target = $region9
    $region8: #{tpu_custom_call.1} parent=1 // pred_region
      _
    $region9: #{tpu_custom_call.1} parent=1 // pred_fallthru
      _
    // Predicated region
    $region10: #{tpu_custom_call.1} parent=1 // pred_check
      _
    $region11: #{tpu_custom_call.1} parent=1 // pred_check_branch
      %19 = sbr.rel (0) target = $region13
    $region12: #{tpu_custom_call.1} parent=1 // pred_region
      _
    $region13: #{tpu_custom_call.1} parent=1 // pred_fallthru
      _
    // Predicated region
    $region14: #{tpu_custom_call.1} parent=1 // pred_check
      _
    $region15: #{tpu_custom_call.1} parent=1 // pred_check_branch
      %21 = sbr.rel (0) target = $region17
    $region16: #{tpu_custom_call.1} parent=1 // pred_region
      _
    $region17: #{tpu_custom_call.1} parent=1 // pred_fallthru
      _
    // Predicated region
    $region18: #{tpu_custom_call.1} parent=1 // pred_check
      _
    $region19: #{tpu_custom_call.1} parent=1 // pred_check_branch
      %23 = sbr.rel (0) target = $region21
    $region20: #{tpu_custom_call.1} parent=1 // pred_region
      _
    $region21: #{tpu_custom_call.1} parent=1 // pred_fallthru
      _
    // Predicated region
    $region22: #{tpu_custom_call.1} parent=1 // pred_check
      _
    $region23: #{tpu_custom_call.1} parent=1 // pred_check_branch
      %25 = sbr.rel (0) target = $region25
    $region24: #{tpu_custom_call.1} parent=1 // pred_region
      _
    $region25: #{tpu_custom_call.1} parent=1 // pred_fallthru
      _
    %v26 = vld [vmem:[%s0] sm:$0x3f]
    %v27 = vld [vmem:[%s2] sm:$0xff]
    %v28 = vld [vmem:[%s2 + $0x8] sm:$0x3]
    %v29 = vld [vmem:[%s3] sm:$0xff]
    %v30 = vld [vmem:[%s3 + $0x8] sm:$0x3]
    %32 = vset.pattern.permute.xlu0 0
    %33 = vperm.xlu0 %32, %v29
    %v34 = vpop.permute.xlu0 %33
    %37 = vset.pattern.permute.xlu0 0
    %38 = vperm.xlu0 %37, %v30
    %v39 = vpop.permute.xlu0 %38
    %vm41 = vcmask 48128
    %v43 = vsel %vm41, %v27, 0
    %v46 = vsel %vm41, %v28, 0
    %vm48 = vcmask 1045504
    %v50 = vsel %vm48, %v26, 0
    %52 = vmatprep.subr.mxu0 0.0
    %53 = vmatpush1.msra.mxu0 0.0
    %54 = vmatprep.subr.mxu0 0.0
    %55 = vmatpush1.msra.mxu0 0.0
    %56 = vmatprep.subr.mxu0 0.0
    %57 = vmatpush1.msra.mxu0 0.0
    %58 = vmatprep.subr.mxu0 0.0
    %59 = vmatpush1.msra.mxu0 0.0
    %60 = vmatprep.subr.mxu0 0.0
    %61 = vmatpush1.msra.mxu0 0.0
    %62 = vmatprep.subr.mxu0 0.0
    %63 = vmatpush1.msra.mxu0 0.0
    %64 = vmatprep.subr.mxu0 0.0
    %65 = vmatpush1.msra.mxu0 0.0
    %66 = vmatprep.subr.mxu0 0.0
    %67 = vmatpush1.msra.mxu0 0.0
    %68 = vmatprep.subr.mxu0 0.0
    %69 = vmatpush1.msra.mxu0 0.0
    %70 = vmatprep.subr.mxu0 0.0
    %71 = vmatpush1.msra.mxu0 0.0
    %72 = vmatprep.subr.mxu0 0.0
    %73 = vmatpush1.msra.mxu0 0.0
    %74 = vmatprep.subr.mxu0 0.0
    %75 = vmatpush1.msra.mxu0 0.0
    %76 = vmatprep.subr.mxu0 0.0
    %77 = vmatpush1.msra.mxu0 0.0
    %78 = vmatprep.subr.mxu0 0.0
    %79 = vmatpush1.msra.mxu0 0.0
    %80 = vmatprep.subr.mxu0 0.0
    %81 = vmatpush1.msra.mxu0 0.0
    %82 = vmatprep.subr.mxu0 0.0
    %83 = vmatpush1.msra.mxu0 %v50
    %84 = vmatprep.subr.mxu0 0.0
    %85 = vmatpush2.msra.mxu0 0.0
    %86 = vmatprep.subr.mxu0 0.0
    %87 = vmatpush2.msra.mxu0 0.0
    %88 = vmatprep.subr.mxu0 0.0
    %89 = vmatpush2.msra.mxu0 0.0
    %90 = vmatprep.subr.mxu0 0.0
    %91 = vmatpush2.msra.mxu0 0.0
    %92 = vmatprep.subr.mxu0 0.0
    %93 = vmatpush2.msra.mxu0 0.0
    %94 = vmatprep.subr.mxu0 0.0
    %95 = vmatpush2.msra.mxu0 0.0
    %96 = vmatprep.subr.mxu0 0.0
    %97 = vmatpush2.msra.mxu0 0.0
    %98 = vmatprep.subr.mxu0 0.0
    %99 = vmatpush2.msra.mxu0 0.0
    %100 = vmatprep.subr.mxu0 0.0
    %101 = vmatpush2.msra.mxu0 0.0
    %102 = vmatprep.subr.mxu0 0.0
    %103 = vmatpush2.msra.mxu0 0.0
    %104 = vmatprep.subr.mxu0 0.0
    %105 = vmatpush2.msra.mxu0 0.0
    %106 = vmatprep.subr.mxu0 0.0
    %107 = vmatpush2.msra.mxu0 0.0
    %108 = vmatprep.subr.mxu0 0.0
    %109 = vmatpush2.msra.mxu0 0.0
    %110 = vmatprep.subr.mxu0 0.0
    %111 = vmatpush2.msra.mxu0 0.0
    %112 = vmatprep.subr.mxu0 0.0
    %113 = vmatpush2.msra.mxu0 0.0
    %114 = vmatprep.subr.mxu0 0.0
    %115 = vmatpush2.msra.mxu0 0.0
    %116 = vmatprep.mubr.f32.mxu0 0.0
    %117 = vmatmul.mubr.f32.gmra.mxu0 %v43
    %v118 = vpop.f32.mrf.mxu0
    %v119 = vadd.f32 %v34, %v118
    %v120 = vpop.f32.mrf.mxu0
    %121 = vmatprep.mubr.f32.mxu0 0.0
    %122 = vmatmul.mubr.f32.gmra.mxu0 %v46
    %v123 = vpop.f32.mrf.mxu0
    %v124 = vadd.f32 %v39, %v123
    %v125 = vpop.f32.mrf.mxu0
    %126 = vdwg.mxu0
    %v127 = vxor.u32 %v119, 2147483648
    %v128 = vxor.u32 %v124, 2147483648
    %v129 = vmul.f32 %v127, 1.442695
    %v130 = vpow.pop %v129
    %v131 = vmul.f32 %v128, 1.442695
    %v132 = vpow.pop %v131
    %v133 = vadd.f32 %v130, 1.0
    %v134 = vadd.f32 %v132, 1.0
    %v135 = vrcp.pop %v133
    %v136 = vmul.f32 1.0, %v135
    %v137 = vrcp.pop %v134
    %v138 = vmul.f32 1.0, %v137
    %v139 = vld [vmem:[%s1] sm:$0xff]
    %v140 = vld [vmem:[%s1 + $0x8] sm:$0x3]
    %v141 = vmul.f32 %v136, %v139
    %v142 = vmul.f32 %v138, %v140
    %v143 = vld [vmem:[%s4] sm:$0xff]
    %v144 = vld [vmem:[%s4 + $0x8] sm:$0x3]
    %146 = vset.pattern.permute.xlu0 0
    %147 = vperm.xlu0 %146, %v143
    %v148 = vpop.permute.xlu0 %147
    %151 = vset.pattern.permute.xlu0 0
    %152 = vperm.xlu0 %151, %v144
    %v153 = vpop.permute.xlu0 %152
    %v155 = vmul.f32 %v141, %v148
    %v156 = vmul.f32 %v142, %v153
    %vm157 = vcmask 1041408
    %v158 = vsel %vm157, %v156, 0.0
    %v159 = vadd.f32 %v155, %v158
    %v160 = vrot.slane %v159, 4
    %v161 = vadd.f32 %v159, %v160
    %v162 = vrot.slane %v161, 2
    %v163 = vadd.f32 %v161, %v162
    %v164 = vrot.slane %v163, 1
    %v165 = vadd.f32 %v163, %v164
    %v166 = vld [vmem:[#allocation2] sm:$0x1]
    %168 = vset.pattern.permute.xlu0 0
    %169 = vperm.xlu0 %168, %v166
    %v170 = vpop.permute.xlu0 %169
    %v172 = vlaneseq
    %v173 = vshrl.u32 %v172, 7
    %v174 = vsub.s32 0, %v173
    %v175 = vrot.slane %v170, %v174
    %v176 = vadd.f32 %v165, %v175
    %v177 = vxor.u32 %v176, 2147483648
    %v178 = vmul.f32 %v177, 1.442695
    %v179 = vpow.pop %v178
    %v180 = vadd.f32 %v179, 1.0
    %v181 = vrcp.pop %v180
    %v182 = vmul.f32 1.0, %v181
    %183 = vst [vmem:[#allocation3] sm:$0x1] %v182
    // Predicated region
    $region26: #{tpu_custom_call.1} parent=1 // pred_check
      _
    $region27: #{tpu_custom_call.1} parent=1 // pred_check_branch
      %185 = sbr.rel (0) target = $region29
    $region28: #{tpu_custom_call.1} parent=1 // pred_region
      %s187 = ssub.s32 16, 16
      %188 = vsyncadd [#allocation4], %s187
      %s190 = sshll.u32 [#allocation3], 4
      %s191 = int_to_ptr.vmem [resolvable:$true] %s190
      %193 = dma.vmem_to_hbm [thread:$0]  %s191, 16, %s6, [#allocation4]
    $region29: #{tpu_custom_call.1} parent=1 // pred_fallthru
      _
    // Predicated region
    $region30: #{tpu_custom_call.1} parent=1 // pred_check
      _
    $region31: #{tpu_custom_call.1} parent=1 // pred_check_branch
      %195 = sbr.rel (0) target = $region33
    $region32: #{tpu_custom_call.1} parent=1 // pred_region
      %196 = dma.done [#allocation4], 16
    $region33: #{tpu_custom_call.1} parent=1 // pred_fallthru
      _
    %197 = vsyncpa [#allocation4], 1

</llo_original>
